<compile_context>
chip_gen: v5e
topology: v5e:2x2
jax: 0.10.0
libtpu: 0.0.40
codegen_flags: <defaults>
</compile_context>

<pallas_src>
import numpy as np
import jax
import jax.numpy as jnp
from jax.experimental import pallas as pl
from jax.experimental.pallas import tpu as pltpu


def build_position_encodings(embed_dim: int, max_seq_len: int) -> jnp.ndarray:
    """Deterministic sinusoidal table, same formula as the PyTorch __init__."""
    pe = np.array(
        [
            [pos / np.power(10000, 2.0 * (i // 2) / embed_dim) for i in range(embed_dim)]
            for pos in range(max_seq_len)
        ],
        dtype=np.float64,
    )
    pe[:, 0::2] = np.sin(pe[:, 0::2])
    pe[:, 1::2] = np.cos(pe[:, 1::2])
    # Forward casts to float32 at the end; keep the table in f32 for the kernel.
    return jnp.asarray(pe.astype(np.float32))


def _pos_embed_kernel(mask_ref, pe_ref, out_ref):
    # mask_ref: (TB, TS, 1) raw int32/f32 mask (nonzero == valid)
    # pe_ref:   (TS, E)     f32 PE tile (block index independent of the batch axis)
    # out_ref:  (TB, TS, E) output slab
    valid = mask_ref[...] != 0                 # VPU compare, in-kernel binarization
    pe = pe_ref[...][None, :, :]               # (1, TS, E), broadcast over TB
    # select (not multiply): no -0.0 on padded rows, NaN/inf-safe.
    out_ref[...] = jnp.where(valid, pe, 0.0).astype(out_ref.dtype)


def _divisors(n: int):
    return [d for d in range(1, n + 1) if n % d == 0]


def _pick_tiles(B, S, E, *, max_tile_seq=None, max_tile_batch=None,
                vmem_budget_bytes=24 << 20,   # double-buffered cap; safe on v7x (64 MiB/TC)
                target_out_bytes=2 << 20,     # aim ~2 MiB of output per grid step
                max_out_bytes=4 << 20):
    """Returns (TS, TB, S_pad)."""
    # ---- sequence tile: 512 lane-dense rows is the measured HBM-roofline knee ----
    row_cap = 512 if max_tile_seq is None else max(1, min(512, int(max_tile_seq)))
    # never let the (double-buffered) PE + single-batch output tile blow the budget
    row_cap = min(row_cap, max(8, vmem_budget_bytes // (16 * E)))

    if S <= row_cap:
        TS, S_pad = S, S                       # full-dim block: always layout-legal
    else:
        TS = None
        t = (row_cap // 8) * 8
        while t >= 8:
            if S % t == 0:
                TS = t
                break
            t -= 8
        if TS is None:
            # No multiple-of-8 divisor <= cap: zero-pad S (replaces the old
            # "whole sequence in one tile" fallback that could blow v7x VMEM).
            TS = max(8, (row_cap // 8) * 8)
            S_pad = ((S + TS - 1) // TS) * TS
        else:
            S_pad = S
    s_tiles = S_pad // TS

    # ---- batch tile: grow until the output slab reaches the target size ----
    def working_set(tb):
        out_blk = tb * TS * E * 4
        pe_blk = TS * E * 4
        mask_blk = tb * TS * 4
        return 2 * (out_blk + pe_blk + mask_blk)   # double-buffered

    cap_b = B if max_tile_batch is None else max(1, min(B, int(max_tile_batch)))
    TB = 1
    for d in _divisors(B):
        if d > cap_b:
            break
        if working_set(d) > vmem_budget_bytes:
            break
        if d > 1 and d * TS * E * 4 > max_out_bytes:
            break
        # keep >=2 blocks on the batch axis when the seq axis degenerates,
        # so v7x megacore still has two shards to hand to its two TensorCores.
        if s_tiles == 1 and B >= 2 and B // d < 2:
            break
        TB = d
        if d * TS * E * 4 >= target_out_bytes:
            break
    return TS, TB, S_pad


def positional_embedding(mask: jnp.ndarray, pos_embed: jnp.ndarray, *,
                         max_tile_seq=None, max_tile_batch=None,
                         out_dtype=jnp.float32) -> jnp.ndarray:
    """mask: [B, S] (nonzero == valid), pos_embed: [S, E] -> [B, S, E] out_dtype."""
    mask = jnp.asarray(mask)
    B, S = mask.shape
    S2, E = pos_embed.shape
    assert S == S2

    TS, TB, S_pad = _pick_tiles(B, S, E, max_tile_seq=max_tile_seq,
                                max_tile_batch=max_tile_batch)
    s_tiles, b_tiles = S_pad // TS, B // TB

    # Raw mask goes straight to the kernel (binarized there); only cast when the
    # dtype is not directly representable in a VMEM block.
    if mask.dtype not in (np.dtype("int32"), np.dtype("float32")):
        mask = mask.astype(jnp.int32)
    mask_in = mask.reshape(B, S, 1)
    pe = pos_embed.astype(jnp.float32)
    if S_pad != S:
        # TODO(synk): replace wrapper-side zero padding with in-kernel tail masking.
        mask_in = jnp.pad(mask_in, ((0, 0), (0, S_pad - S), (0, 0)))
        pe = jnp.pad(pe, ((0, S_pad - S), (0, 0)))

    cost = pl.CostEstimate(
        flops=B * S_pad * E,
        transcendentals=0,
        # output write + PE read (once per seq tile) + mask read
        bytes_accessed=4 * B * S_pad * E + 4 * S_pad * E + 4 * B * S_pad,
    )

    out = pl.pallas_call(
        _pos_embed_kernel,
        out_shape=jax.ShapeDtypeStruct((B, S_pad, E), out_dtype),
        grid_spec=pltpu.PrefetchScalarGridSpec(
            num_scalar_prefetch=0,
            # seq tiles OUTER, batch tiles INNER -> the PE block index is constant
            # over the inner loop, so its HBM->VMEM copy is skipped for b > 0.
            grid=(s_tiles, b_tiles),
            in_specs=[
                # raw (TB, TS, 1) mask column for (seq tile s, batch tile b)
                pl.BlockSpec((TB, TS, 1), lambda s, b: (b, s, 0)),
                # (TS, E) PE tile; independent of b (reused across the batch)
                pl.BlockSpec((TS, E), lambda s, b: (s, 0)),
            ],
            # Lane-dense (TB, TS, E) output slab (~target 2 MiB per grid step).
            out_specs=pl.BlockSpec((TB, TS, E), lambda s, b: (b, s, 0)),
        ),
        compiler_params=pltpu.CompilerParams(
            dimension_semantics=("parallel", "parallel"),
            # 32 MiB covers the 24 MiB double-buffered cap, lifts v5e's 16 MiB
            # default scoped limit, and stays well under v7x's 64 MiB/TC physical.
            vmem_limit_bytes=32 << 20,
        ),
        cost_estimate=cost,
    )(mask_in, pe)

    if S_pad != S:
        out = out[:, :S, :]
    return out


if __name__ == "__main__":
    # Small shapes consistent with the module (embed dim a lane multiple so
    # stores are fully lane-dense; seq small enough to also test forced tiling).
    batch, max_seq_len, embed_dim = 2, 16, 128

    pos_embed = build_position_encodings(embed_dim, max_seq_len)

    # Deterministic "knowledge_mask"-style integer lengths: 0 == pad.
    key = jax.random.PRNGKey(0)
    mask = jax.random.randint(key, (batch, max_seq_len), minval=0, maxval=3, dtype=jnp.int32)

    # Reference (plain JAX, mirrors the PyTorch forward).
    ref = jnp.where((mask != 0)[:, :, None], pos_embed[None, :, :], 0.0).astype(jnp.float32)

    # 1) Auto-tiled path (single seq tile, 2 batch blocks -> megacore-friendly grid).
    out = jax.block_until_ready(positional_embedding(mask, pos_embed))
    np.testing.assert_allclose(np.asarray(out), np.asarray(ref), rtol=1e-6, atol=1e-6)
    assert out.shape == (batch, max_seq_len, embed_dim)
    assert out.dtype == jnp.float32

    # 2) Forced small tiles (2 seq tiles x 2 batch steps; exercises PE reuse across batch).
    out2 = jax.block_until_ready(
        positional_embedding(mask, pos_embed, max_tile_seq=8, max_tile_batch=1))
    np.testing.assert_allclose(np.asarray(out2), np.asarray(ref), rtol=1e-6, atol=1e-6)

    # 3) Non-divisible sequence length -> zero-padded remainder path (no full-seq fallback).
    seq3 = 20
    pos_embed3 = build_position_encodings(embed_dim, seq3)
    mask3 = jax.random.randint(jax.random.PRNGKey(0), (batch, seq3),
                               minval=0, maxval=3, dtype=jnp.int32)
    ref3 = jnp.where((mask3 != 0)[:, :, None], pos_embed3[None, :, :], 0.0).astype(jnp.float32)
    out3 = jax.block_until_ready(positional_embedding(mask3, pos_embed3, max_tile_seq=8))
    np.testing.assert_allclose(np.asarray(out3), np.asarray(ref3), rtol=1e-6, atol=1e-6)
    assert out3.shape == (batch, seq3, embed_dim)

    print("KERNEL_OK")
</pallas_src>

<mosaic_0001>
module attributes {stable_mosaic.version = 11 : i64} {
  func.func @_pos_embed_kernel(%arg0: i32, %arg1: i32, %arg2: memref<1x16x1xi32, #tpu.memory_space<vmem>>, %arg3: memref<16x128xf32, #tpu.memory_space<vmem>>, %arg4: memref<1x16x128xf32, #tpu.memory_space<vmem>>) attributes {dimension_semantics = [#tpu.dimension_semantics<parallel>, #tpu.dimension_semantics<parallel>], iteration_bounds = array<i64: 1, 2>, scalar_prefetch = 0 : i64, scratch_operands = 0 : i64, tpu.core_type = #tpu.core_type<tc>, window_params = [{transform_indices = @transform_0, window_bounds = array<i64: 1, 16, 1>}, {transform_indices = @transform_1, window_bounds = array<i64: 16, 128>}, {transform_indices = @transform_2, window_bounds = array<i64: 1, 16, 128>}]} {
    %c0 = arith.constant 0 : index
    %c0_0 = arith.constant 0 : index
    %c0_1 = arith.constant 0 : index
    %0 = vector.load %arg2[%c0, %c0_0, %c0_1] : memref<1x16x1xi32, #tpu.memory_space<vmem>>, vector<1x16x1xi32>
    %c0_i32 = arith.constant 0 : i32
    %1 = vector.broadcast %c0_i32 : i32 to vector<1x16x1xi32>
    %2 = arith.cmpi ne, %0, %1 : vector<1x16x1xi32>
    %c0_2 = arith.constant 0 : index
    %c0_3 = arith.constant 0 : index
    %3 = vector.load %arg3[%c0_2, %c0_3] : memref<16x128xf32, #tpu.memory_space<vmem>>, vector<16x128xf32>
    %4 = vector.shape_cast %3 : vector<16x128xf32> to vector<1x16x128xf32>
    %cst = arith.constant 0.000000e+00 : f32
    %5 = vector.shape_cast %2 : vector<1x16x1xi1> to vector<1x16x1xi1>
    %6 = vector.broadcast %5 : vector<1x16x1xi1> to vector<1x16x128xi1>
    %7 = vector.broadcast %cst : f32 to vector<1x16x128xf32>
    %8 = arith.select %6, %4, %7 : vector<1x16x128xi1>, vector<1x16x128xf32>
    %c0_4 = arith.constant 0 : index
    %c0_5 = arith.constant 0 : index
    %c0_6 = arith.constant 0 : index
    %9 = vector.load %arg4[%c0_4, %c0_5, %c0_6] : memref<1x16x128xf32, #tpu.memory_space<vmem>>, vector<1x16x128xf32>
    tpu.vector_store %arg4[%c0_4, %c0_5, %c0_6], %8 {strides = array<i32>} : memref<1x16x128xf32, #tpu.memory_space<vmem>>, vector<1x16x128xf32>,
    return
  }
  func.func @transform_0(%arg0: i32, %arg1: i32) -> (i32, i32, i32) {
    %c0_i32 = arith.constant 0 : i32
    %c0_i32_0 = arith.constant 0 : i32
    return %arg1, %arg0, %c0_i32 : i32, i32, i32
  }
  func.func @transform_1(%arg0: i32, %arg1: i32) -> (i32, i32) {
    %c0_i32 = arith.constant 0 : i32
    %c0_i32_0 = arith.constant 0 : i32
    return %arg0, %c0_i32 : i32, i32
  }
  func.func @transform_2(%arg0: i32, %arg1: i32) -> (i32, i32, i32) {
    %c0_i32 = arith.constant 0 : i32
    %c0_i32_0 = arith.constant 0 : i32
    return %arg1, %arg0, %c0_i32 : i32, i32, i32
  }
}

</mosaic_0001>

<llo_original>
// kernel: tpu_custom_call.1
$region0: #{tpu_custom_call.1}
  #allocation0 [shape = 'u32[]', space=smem, size = 0x4, offset = 0x4, fixed_abs, tag = 'smem constant byte address 0x4 - core index']
  #allocation1 [shape = 'u32[72,128]{1,0:T(1,128)}', space=vmem, size = 0x9000, scoped, tag = 'internal scratch']
  %s0 = inlined_call_operand.vmem [shape: s32[2,16,1], index: 0, kind: input, shape index: {}]
  %s1 = inlined_call_operand.vmem [shape: f32[16,128], index: 1, kind: input, shape index: {}]
  %s2 = inlined_call_operand.hbm [shape: f32[2,16,128], index: 2, kind: output, shape index: {}]
  %s3 = sld [smem:[#allocation0]]
  $region41: #{tpu_custom_call.1} parent=0
    _
  %s5 = ssub.s32 1, %s3
  %s6 = scalar_select 0, %s5, %s3
  $region1: #{tpu_custom_call.1} parent=0
    #allocation2 [shape = 'u8[16384]{0}', space=vmem, size = 0x4000, scoped, tag = 'output window, operand 0']
    #allocation3 [shape = 's32[2]{0}', space=sflag, size = 0x8, scoped, tag = 'scoped memory for tpu_custom_call.1']
    %7 = vsyncpa [#allocation3], 0
    %s8 = scalar_lea.sflag [#allocation3], 1
    %9 = vsyncpa %s8, 0
    loop: start=0, step=1, limit=4
    $region2: #{tpu_custom_call.1} parent=1 // loop_pre_header
      _
    $region3: #{tpu_custom_call.1} parent=1 // loop_header
      %s11 = sphi 0, %s15
      %p12 = scmp.ge.s32.totalorder %s11, 4
      %s18 = sphi 0, %s30
      %s19 = sphi 0, %s26
      %s20 = sphi 0, %s18
      %s21 = sphi 0, %s19
      %s22 = sphi 0, %s20
      %s23 = sphi 0, %s21
      %s35 = sphi 0, %s37
      %s38 = sphi 0, %s35
      %s39 = sphi 0, %s38
      %s55 = sphi 0, %s39
      %s61 = sphi 0, %s63
      %s64 = sphi 0, %s61
      %s65 = sphi 0, %s64
      %s81 = sphi 0, %s65
      %s89 = sphi 0, %s91
      %s92 = sphi 0, %s89
      %s93 = sphi 0, %s92
      %s109 = sphi 0, %s93
    $region4: #{tpu_custom_call.1} parent=1 // loop_header_branch
      %14 = sbr.rel (%p12) target = $region8
    $region5: #{tpu_custom_call.1} parent=1 // loop_body
      %s16 = ssub.s32 %s11, 1
      %s17 = ssub.s32 %s11, 2
      %s24 = sadd.s32 1, %s19
      %p25 = scmp.ge.s32.totalorder %s24, 2
      %s26 = scalar_select %p25, 0, %s24
      %s27 = sadd.s32 1, %s18
      %s28 = scalar_select %p25, %s27, %s18
      %p29 = scmp.ge.s32.totalorder %s28, 1
      %s30 = scalar_select %p29, 0, %s28
      %s31 = ssub.s32 %s19, %s26
      %s32 = ssub.s32 %s18, %s30
      %s33 = sor.u32 %s31, %s32
      %p34 = scmp.eq.s32.totalorder %s33, 0
      %s36 = sadd.s32 %s35, 1
      %s37 = scalar_select %p34, %s35, %s36
      %p40 = pneg %p34
      %p41 = scmp.eq.s32.totalorder %s11, 1
      %p42 = por %p40, %p41
      %p43 = scmp.ne.s32.totalorder %s35, %s38
      %p44 = scmp.eq.s32.totalorder %s11, 0
      %p45 = por %p43, %p44
      %p46 = scmp.ne.s32.totalorder %s35, %s38
      %p47 = scmp.eq.s32.totalorder %s16, 1
      %p48 = por %p46, %p47
      %p49 = scmp.ne.s32.totalorder %s38, %s39
      %p50 = scmp.eq.s32.totalorder %s16, 0
      %p51 = por %p49, %p50
      %p52 = scmp.ne.s32.totalorder %s38, %s39
      %p53 = scmp.eq.s32.totalorder %s17, 1
      %p54 = por %p52, %p53
      %p56 = scmp.ne.s32.totalorder %s39, %s55
      %p57 = scmp.eq.s32.totalorder %s17, 0
      %p58 = por %p56, %p57
      %s59 = ssub.s32 %s18, %s30
      %p60 = scmp.eq.s32.totalorder %s59, 0
      %s62 = sadd.s32 %s61, 1
      %s63 = scalar_select %p60, %s61, %s62
      %p66 = pneg %p60
      %p67 = scmp.eq.s32.totalorder %s11, 1
      %p68 = por %p66, %p67
      %p69 = scmp.ne.s32.totalorder %s61, %s64
      %p70 = scmp.eq.s32.totalorder %s11, 0
      %p71 = por %p69, %p70
      %p72 = scmp.ne.s32.totalorder %s61, %s64
      %p73 = scmp.eq.s32.totalorder %s16, 1
      %p74 = por %p72, %p73
      %p75 = scmp.ne.s32.totalorder %s64, %s65
      %p76 = scmp.eq.s32.totalorder %s16, 0
      %p77 = por %p75, %p76
      %p78 = scmp.ne.s32.totalorder %s64, %s65
      %p79 = scmp.eq.s32.totalorder %s17, 1
      %p80 = por %p78, %p79
      %p82 = scmp.ne.s32.totalorder %s65, %s81
      %p83 = scmp.eq.s32.totalorder %s17, 0
      %p84 = por %p82, %p83
      %s85 = ssub.s32 %s19, %s26
      %s86 = ssub.s32 %s18, %s30
      %s87 = sor.u32 %s85, %s86
      %p88 = scmp.eq.s32.totalorder %s87, 0
      %s90 = sadd.s32 %s89, 1
      %s91 = scalar_select %p88, %s89, %s90
      %p94 = pneg %p88
      %p95 = scmp.eq.s32.totalorder %s11, 1
      %p96 = por %p94, %p95
      %p97 = scmp.ne.s32.totalorder %s89, %s92
      %p98 = scmp.eq.s32.totalorder %s11, 0
      %p99 = por %p97, %p98
      %p100 = scmp.ne.s32.totalorder %s89, %s92
      %p101 = scmp.eq.s32.totalorder %s16, 1
      %p102 = por %p100, %p101
      %p103 = scmp.ne.s32.totalorder %s92, %s93
      %p104 = scmp.eq.s32.totalorder %s16, 0
      %p105 = por %p103, %p104
      %p106 = scmp.ne.s32.totalorder %s92, %s93
      %p107 = scmp.eq.s32.totalorder %s17, 1
      %p108 = por %p106, %p107
      %p110 = scmp.ne.s32.totalorder %s93, %s109
      %p111 = scmp.eq.s32.totalorder %s17, 0
      %p112 = por %p110, %p111
      %p113 = scmp.le.s32.totalorder 1, %s11
      %p114 = scmp.lt.s32.totalorder %s11, 3
      %p115 = pnand %p113, %p114
      %p116 = pneg %p115
      // Predicated region
      $region9: #{tpu_custom_call.1} parent=5 // pred_check
        _
      $region10: #{tpu_custom_call.1} parent=5 // pred_check_branch
        %118 = sbr.rel (%p115) target = $region12
      $region11: #{tpu_custom_call.1} parent=5 // pred_region
        %s119 = ssub.s32 %s11, 1
        // Predicated region
        $region13: #{tpu_custom_call.1} parent=11 // pred_check
          %p120 = pneg %p77
        $region14: #{tpu_custom_call.1} parent=11 // pred_check_branch
          %122 = sbr.rel (%p120) target = $region16
        $region15: #{tpu_custom_call.1} parent=11 // pred_region
          %s123 = smul.u32 2, %s20
          %p124 = scmp.lt.s32.totalorder %s123, 1
          %s125 = scalar_select %p124, %s123, 1
          %s126 = smul.addr %s125, 8
          %s127 = scalar_lea.vmem %s1, %s126
          %s128 = smul.u32 2, %s20
        $region16: #{tpu_custom_call.1} parent=11 // pred_fallthru
          _
      $region12: #{tpu_custom_call.1} parent=5 // pred_fallthru
        _
      %p129 = scmp.lt.s32.totalorder %s11, 2
      // Predicated region
      $region17: #{tpu_custom_call.1} parent=5 // pred_check
        %p130 = pneg %p129
      $region18: #{tpu_custom_call.1} parent=5 // pred_check_branch
        %132 = sbr.rel (%p130) target = $region20
      $region19: #{tpu_custom_call.1} parent=5 // pred_region
        // Predicated region
        $region21: #{tpu_custom_call.1} parent=19 // pred_check
          %p133 = pneg %p45
        $region22: #{tpu_custom_call.1} parent=19 // pred_check_branch
          %135 = sbr.rel (%p133) target = $region24
        $region23: #{tpu_custom_call.1} parent=19 // pred_region
          %s136 = smul.u32 2, %s18
          %p137 = scmp.lt.s32.totalorder %s19, 1
          %s138 = scalar_select %p137, %s19, 1
          %p139 = scmp.lt.s32.totalorder %s136, 1
          %s140 = scalar_select %p139, %s136, 1
          %s141 = smul.addr %s138, 2
          %s142 = sadd.s32 %s140, %s141
          %s143 = smul.addr %s142, 8
          %s144 = scalar_lea.vmem %s0, %s143
          %s145 = smul.u32 2, %s18
        $region24: #{tpu_custom_call.1} parent=19 // pred_fallthru
          _
      $region20: #{tpu_custom_call.1} parent=5 // pred_fallthru
        _
      %p146 = scmp.le.s32.totalorder 1, %s11
      %p147 = scmp.lt.s32.totalorder %s11, 3
      %p148 = pnand %p146, %p147
      %p149 = pneg %p148
      // Predicated region
      $region25: #{tpu_custom_call.1} parent=5 // pred_check
        _
      $region26: #{tpu_custom_call.1} parent=5 // pred_check_branch
        %151 = sbr.rel (%p148) target = $region28
      $region27: #{tpu_custom_call.1} parent=5 // pred_region
        %s152 = ssub.s32 %s11, 1
        %s153 = smul.u32 2, %s20
        %p154 = scmp.lt.s32.totalorder %s21, 1
        %s155 = scalar_select %p154, %s21, 1
        %p156 = scmp.lt.s32.totalorder %s153, 1
        %s157 = scalar_select %p156, %s153, 1
        %s158 = smul.addr %s155, 2
        %s159 = sadd.s32 %s157, %s158
        %s160 = smul.addr %s159, 8
        %s161 = scalar_lea.vmem %s0, %s160
        %p162 = pneg %p51
        %p163 = pneg %p48
        %s164 = smul.u32 2, %s20
        %p165 = scmp.lt.s32.totalorder %s164, 1
        %s166 = scalar_select %p165, %s164, 1
        %s167 = smul.addr %s166, 8
        %s168 = scalar_lea.vmem %s1, %s167
        %p169 = pneg %p77
        %p170 = pneg %p74
        %p171 = pneg %p105
        %p172 = pneg %p102
        %s173 = sand.u32 %s92, 1
        %s174 = scalar_lea.sflag [#allocation3], %s173
        %s175 = sand.u32 %s92, 1
        %s176 = smul.addr %s175, 16
        %s177 = scalar_lea.vmem [#allocation2], %s176
        %s178 = smul.u32 2, %s20
        %p179 = scmp.lt.s32.totalorder %s21, 1
        %s180 = scalar_select %p179, %s21, 1
        %p181 = scmp.lt.s32.totalorder %s178, 1
        %s182 = scalar_select %p181, %s178, 1
        %s183 = smul.addr %s180, 2
        %s184 = sadd.s32 %s182, %s183
        %s185 = smul.addr %s184, 8
        %s186 = scalar_lea.vmem %s0, %s185
        %s187 = smul.u32 2, %s20
        %s188 = smul.u32 2, %s20
        %p189 = scmp.lt.s32.totalorder %s188, 1
        %s190 = scalar_select %p189, %s188, 1
        %s191 = smul.addr %s190, 8
        %s192 = scalar_lea.vmem %s1, %s191
        %s193 = smul.u32 2, %s20
        %s194 = smul.u32 2, %s20
        %v195 = vld [vmem:[%s186] sm:$0xff]
        %v196 = vld [vmem:[%s186 + $0x8] sm:$0xff]
        %vm197 = vcmp.ne.s32.totalorder %v195, 0
        %vm198 = vcmp.ne.s32.totalorder %v196, 0
        %v199 = vld [vmem:[%s192] sm:$0xff]
        %v200 = vld [vmem:[%s192 + $0x8] sm:$0xff]
        %v201 = vsel %vm197, 1, 0
        %v202 = vsel %vm198, 1, 0
        %203 = vset.pattern.permute.xlu0 0
        %204 = vperm.xlu0 %203, %v201
        %v205 = vpop.permute.xlu0 %204
        %206 = vset.pattern.permute.xlu0 0
        %207 = vperm.xlu0 %206, %v202
        %v208 = vpop.permute.xlu0 %207
        %vm209 = vcmp.eq.s32.totalorder %v205, 1
        %vm210 = vcmp.eq.s32.totalorder %v208, 1
        %v211 = vsel %vm209, %v199, 0.0
        %v212 = vsel %vm210, %v200, 0.0
        %213 = vst [vmem:[%s177] sm:$0xff] %v211
        %214 = vst [vmem:[%s177 + $0x8] sm:$0xff] %v212
        %s215 = sand.u32 %s92, 1
        %s216 = scalar_lea.sflag [#allocation3], %s215
        %s217 = sand.u32 %s92, 1
        %s218 = smul.addr %s217, 16
        %s219 = scalar_lea.vmem [#allocation2], %s218
        // Predicated region
        $region29: #{tpu_custom_call.1} parent=27 // pred_check
          %p220 = pneg %p102
        $region30: #{tpu_custom_call.1} parent=27 // pred_check_branch
          %222 = sbr.rel (%p220) target = $region32
        $region31: #{tpu_custom_call.1} parent=27 // pred_region
          %s223 = smul.u32 2, %s20
          %225 = vsyncadd %s216, 0
          %s226 = smul.addr %s21, 2
          %s227 = sadd.s32 %s223, %s226
          %s228 = smul.addr %s227, 8
          %s229 = scalar_lea.hbm %s2, %s228
          %s230 = sshll.u32 %s219, 4
          %s231 = int_to_ptr.vmem [resolvable:$true] %s230
          %s232 = sshll.u32 %s229, 4
          %s233 = int_to_ptr.hbm [resolvable:$true] %s232
          %238 = dma.vmem_to_hbm [thread:$0]  %s231, 256, %s233, %s216, 128, 128, 8
        $region32: #{tpu_custom_call.1} parent=27 // pred_fallthru
          _
      $region28: #{tpu_custom_call.1} parent=5 // pred_fallthru
        _
      %p239 = scmp.le.s32.totalorder 2, %s11
      // Predicated region
      $region33: #{tpu_custom_call.1} parent=5 // pred_check
        %p240 = pneg %p239
      $region34: #{tpu_custom_call.1} parent=5 // pred_check_branch
        %242 = sbr.rel (%p240) target = $region36
      $region35: #{tpu_custom_call.1} parent=5 // pred_region
        %s243 = ssub.s32 %s11, 2
        // Predicated region
        $region37: #{tpu_custom_call.1} parent=35 // pred_check
          %p244 = pneg %p108
        $region38: #{tpu_custom_call.1} parent=35 // pred_check_branch
          %246 = sbr.rel (%p244) target = $region40
        $region39: #{tpu_custom_call.1} parent=35 // pred_region
          %s247 = sand.u32 %s93, 1
          %s248 = scalar_lea.sflag [#allocation3], %s247
          %s249 = sand.u32 %s93, 1
          %s250 = smul.addr %s249, 16
          %s251 = scalar_lea.vmem [#allocation2], %s250
          %253 = dma.done %s248, 256
        $region40: #{tpu_custom_call.1} parent=35 // pred_fallthru
          _
      $region36: #{tpu_custom_call.1} parent=5 // pred_fallthru
        _
    $region6: #{tpu_custom_call.1} parent=1 // loop_footer
      %s15 = sadd.s32 1, %s11
    $region7: #{tpu_custom_call.1} parent=1 // loop_footer_branch
      %10 = sbr.rel target = $region3
    $region8: #{tpu_custom_call.1} parent=1 // loop_exit
      _
    %254 = vsyncpa [#allocation3], 1
    %s255 = scalar_lea.sflag [#allocation3], 1
    %256 = vsyncpa %s255, 1

</llo_original>
